<compile_context>
chip_gen: v7x
topology: tpu7x:2x2x1
jax: 0.10.0
libtpu: 0.0.40
codegen_flags: <defaults>
</compile_context>

<pallas_src>
import jax
import jax.numpy as jnp
from jax.experimental import pallas as pl
from jax.experimental.pallas import tpu as pltpu  # noqa: F401  (TPU backend)

# Constant weight value from the module: torch.ones((2, 2)) * 0.3
_W_CONST = 0.3

# Below this contraction length the matmul stays on the VPU (no MXU pass).
_VPU_K_MAX = 8


def _sample_model_kernel(a_ref, b_ref, o_ref):
    # y = (a @ b) + (b + 0.3), fully fused in one kernel body.
    a = a_ref[...]
    b = b_ref[...]
    K = a.shape[1]

    if K <= _VPU_K_MAX:
        # Pure-VPU formulation: unrolled sum of rank-1 updates.
        # Avoids driving a full MXU pass (and its result-FIFO pop) for a
        # contraction that fits in a couple of fmul/fadd on one vreg, and is
        # exact f32 (no bf16 pass).
        x = a[:, 0:1] * b[0:1, :]
        for k in range(1, K):
            x = x + a[:, k:k + 1] * b[k:k + 1, :]
    else:
        # Non-toy fallback (dead for this module): exact-precision MXU matmul.
        x = jnp.dot(a, b, preferred_element_type=jnp.float32,
                    precision=jax.lax.Precision.HIGHEST)

    o_ref[...] = (x + (b + _W_CONST)).astype(o_ref.dtype)


def sample_model_forward(a, b):
    """y = (a @ b + b) + 0.3 in a single Pallas kernel invocation.

    Shapes are tiny (2x2), so each array is one full-extent block resident in
    VMEM; the whole call is fixed-cost (launch + DMAs), so the design goal is
    minimal operand count and zero MXU involvement rather than compute tuning.
    """
    M, K = a.shape
    K2, N = b.shape
    assert K == K2, "contraction dims must match"
    # prod_add adds b (K, N) to a@b (M, N): requires M == K for the module's
    # intended (non-broadcast) semantics.  This also makes b and y the same
    # shape, which is what lets us alias b's buffer to the output.
    assert M == K, "prod_add's `+ b` requires M == K (x is (M,N), b is (K,N))"

    out_shape = jax.ShapeDtypeStruct((M, N), jnp.float32)

    cost = pl.CostEstimate(
        flops=2 * M * N * K + 2 * M * N,          # matmul + two adds
        transcendentals=0,
        bytes_accessed=4 * (M * K + K * N + M * N),
    )

    return pl.pallas_call(
        _sample_model_kernel,
        out_shape=out_shape,
        in_specs=[
            pl.BlockSpec((M, K), lambda: (0, 0)),
            pl.BlockSpec((K, N), lambda: (0, 0)),
        ],
        out_specs=pl.BlockSpec((M, N), lambda: (0, 0)),
        grid=(),
        # b (input 1) -> y (output 0): lets XLA reuse/donate b's HBM buffer
        # when the surrounding graph allows it; correct either way (XLA
        # inserts a copy if b must be preserved).
        input_output_aliases={1: 0},
        cost_estimate=cost,
    )(a, b)


if __name__ == "__main__":
    key = jax.random.PRNGKey(0)
    ka, kb = jax.random.split(key)

    # Shapes implied by the module: w is (2, 2) and x + w must broadcast,
    # so a and b are (2, 2) as well.
    a = jax.random.normal(ka, (2, 2), dtype=jnp.float32)
    b = jax.random.normal(kb, (2, 2), dtype=jnp.float32)

    # Reference computed BEFORE the kernel call: the kernel aliases b to its
    # output, so we never rely on b's buffer surviving the call.
    w = jnp.ones((2, 2), dtype=jnp.float32) * 0.3
    y_ref = (a @ b + b) + w
    y_ref = jax.block_until_ready(y_ref)

    y = sample_model_forward(a, b)
    y = jax.block_until_ready(y)

    assert jnp.allclose(y, y_ref, atol=1e-5, rtol=1e-5), (y, y_ref)

    print("KERNEL_OK")
</pallas_src>

<mosaic_0001>
module attributes {stable_mosaic.version = 11 : i64} {
  func.func @_sample_model_kernel(%arg0: memref<2x2xf32, #tpu.memory_space<vmem>>, %arg1: memref<2x2xf32, #tpu.memory_space<vmem>>, %arg2: memref<2x2xf32, #tpu.memory_space<vmem>>) attributes {dimension_semantics = [], scalar_prefetch = 0 : i64, scratch_operands = 0 : i64, tpu.core_type = #tpu.core_type<tc>} {
    %c0 = arith.constant 0 : index
    %c0_0 = arith.constant 0 : index
    %0 = vector.load %arg0[%c0, %c0_0] : memref<2x2xf32, #tpu.memory_space<vmem>>, vector<2x2xf32>
    %c0_1 = arith.constant 0 : index
    %c0_2 = arith.constant 0 : index
    %1 = vector.load %arg1[%c0_1, %c0_2] : memref<2x2xf32, #tpu.memory_space<vmem>>, vector<2x2xf32>
    %2 = vector.extract_strided_slice %0 {offsets = [0, 0], sizes = [2, 1], strides = [1, 1]} : vector<2x2xf32> to vector<2x1xf32>
    %3 = vector.extract_strided_slice %1 {offsets = [0, 0], sizes = [1, 2], strides = [1, 1]} : vector<2x2xf32> to vector<1x2xf32>
    %4 = vector.broadcast %2 : vector<2x1xf32> to vector<2x2xf32>
    %5 = vector.broadcast %3 : vector<1x2xf32> to vector<2x2xf32>
    %6 = arith.mulf %4, %5 : vector<2x2xf32>
    %7 = vector.extract_strided_slice %0 {offsets = [0, 1], sizes = [2, 1], strides = [1, 1]} : vector<2x2xf32> to vector<2x1xf32>
    %8 = vector.extract_strided_slice %1 {offsets = [1, 0], sizes = [1, 2], strides = [1, 1]} : vector<2x2xf32> to vector<1x2xf32>
    %9 = vector.broadcast %7 : vector<2x1xf32> to vector<2x2xf32>
    %10 = vector.broadcast %8 : vector<1x2xf32> to vector<2x2xf32>
    %11 = arith.mulf %9, %10 : vector<2x2xf32>
    %12 = arith.addf %6, %11 : vector<2x2xf32>
    %cst = arith.constant 3.000000e-01 : f32
    %13 = vector.broadcast %cst : f32 to vector<2x2xf32>
    %14 = arith.addf %1, %13 : vector<2x2xf32>
    %15 = arith.addf %12, %14 : vector<2x2xf32>
    %c0_3 = arith.constant 0 : index
    %c0_4 = arith.constant 0 : index
    %16 = vector.load %arg2[%c0_3, %c0_4] : memref<2x2xf32, #tpu.memory_space<vmem>>, vector<2x2xf32>
    tpu.vector_store %arg2[%c0_3, %c0_4], %15 {strides = array<i32>} : memref<2x2xf32, #tpu.memory_space<vmem>>, vector<2x2xf32>,
    return
  }
}

</mosaic_0001>

<llo_original>
// kernel: tpu_custom_call.1
$region0: #{tpu_custom_call.1}
  #allocation0 [shape = 'u32[]', space=smem, size = 0x4, offset = 0x4, fixed_abs, tag = 'smem constant byte address 0x4 - core index']
  #allocation1 [shape = 'u32[144,128]{1,0:T(1,128)}', space=vmem, size = 0x12000, scoped, tag = 'internal scratch']
  %s0 = inlined_call_operand.vmem [shape: f32[2,2], index: 0, kind: input, shape index: {}]
  %s1 = inlined_call_operand.hbm [shape: f32[2,2], index: 1, kind: input, shape index: {}, may-alias: {1,2}]
  %s2 = inlined_call_operand.hbm [shape: f32[2,2], index: 2, kind: output, shape index: {}, may-alias: {1,2}]
  %s3 = sld [smem:[#allocation0]]
  $region22: #{tpu_custom_call.1} parent=0
    _
  %s5 = ssub.s32 1, %s3
  %s6 = scalar_select 0, %s5, %s3
  $region1: #{tpu_custom_call.1} parent=0
    #allocation2 [shape = 'u8[1024]{0}', space=vmem, size = 0x400, scoped, tag = 'input window, operand 1, single buffered']
    #allocation3 [shape = 's32[1]{0}', space=sflag, size = 0x4, scoped, tag = 'scoped memory for tpu_custom_call.1']
    #allocation4 [shape = 's32[1]{0}', space=sflag, size = 0x4, scoped, tag = 'scoped memory for tpu_custom_call.1']
    #allocation5 [shape = 'u8[1024]{0}', space=vmem, size = 0x400, scoped, tag = 'output window, operand 0, single buffered']
    %7 = vsyncpa [#allocation3], 0
    %8 = vsyncpa [#allocation4], 0
    // Predicated region
    $region2: #{tpu_custom_call.1} parent=1 // pred_check
      _
    $region3: #{tpu_custom_call.1} parent=1 // pred_check_branch
      %10 = sbr.rel (0) target = $region5
    $region4: #{tpu_custom_call.1} parent=1 // pred_region
      _
    $region5: #{tpu_custom_call.1} parent=1 // pred_fallthru
      _
    // Predicated region
    $region6: #{tpu_custom_call.1} parent=1 // pred_check
      _
    $region7: #{tpu_custom_call.1} parent=1 // pred_check_branch
      %12 = sbr.rel (0) target = $region9
    $region8: #{tpu_custom_call.1} parent=1 // pred_region
      %s14 = ssub.s32 32, 32
      %15 = vsyncadd [#allocation3], %s14
      %s17 = sshll.u32 [#allocation2], 4
      %s18 = int_to_ptr.vmem [resolvable:$true] %s17
      %20 = dma.hbm_to_vmem [thread:$0]  %s1, 32, %s18, [#allocation3]
    $region9: #{tpu_custom_call.1} parent=1 // pred_fallthru
      _
    // Predicated region
    $region10: #{tpu_custom_call.1} parent=1 // pred_check
      _
    $region11: #{tpu_custom_call.1} parent=1 // pred_check_branch
      %22 = sbr.rel (0) target = $region13
    $region12: #{tpu_custom_call.1} parent=1 // pred_region
      %23 = dma.done [#allocation3], 32
    $region13: #{tpu_custom_call.1} parent=1 // pred_fallthru
      _
    %v24 = vld [vmem:[%s0] sm:$0x3]
    %v25 = vld [vmem:[#allocation2] sm:$0x3]
    %27 = vset.pattern.permute.xlu0 0
    %28 = vperm.xlu0 %27, %v24
    %v29 = vpop.permute.xlu0 %28
    %v31 = vlaneseq
    %v32 = vshrl.u32 %v31, 7
    %v33 = vsub.s32 0, %v32
    %v34 = vrot.slane %v25, %v33
    %v35 = vmul.f32 %v29, %v34
    %36 = vset.pattern.permute.xlu0 1
    %37 = vperm.xlu0 %36, %v24
    %v38 = vpop.permute.xlu0 %37
    %v40 = vlaneseq
    %v41 = vshrl.u32 %v40, 7
    %v42 = vsub.s32 1, %v41
    %v43 = vrot.slane %v25, %v42
    %v44 = vmul.f32 %v38, %v43
    %v45 = vadd.f32 %v35, %v44
    %v46 = vadd.f32 %v25, 0.3
    %v47 = vadd.f32 %v45, %v46
    %vm48 = vcmask 9216
    %49 = vst.msk [vmem:[#allocation5] sm:$0x3] %vm48, %v47
    // Predicated region
    $region14: #{tpu_custom_call.1} parent=1 // pred_check
      _
    $region15: #{tpu_custom_call.1} parent=1 // pred_check_branch
      %51 = sbr.rel (0) target = $region17
    $region16: #{tpu_custom_call.1} parent=1 // pred_region
      %s53 = ssub.s32 32, 32
      %54 = vsyncadd [#allocation4], %s53
      %s56 = sshll.u32 [#allocation5], 4
      %s57 = int_to_ptr.vmem [resolvable:$true] %s56
      %59 = dma.vmem_to_hbm [thread:$0]  %s57, 32, %s2, [#allocation4]
    $region17: #{tpu_custom_call.1} parent=1 // pred_fallthru
      _
    // Predicated region
    $region18: #{tpu_custom_call.1} parent=1 // pred_check
      _
    $region19: #{tpu_custom_call.1} parent=1 // pred_check_branch
      %61 = sbr.rel (0) target = $region21
    $region20: #{tpu_custom_call.1} parent=1 // pred_region
      %62 = dma.done [#allocation4], 32
    $region21: #{tpu_custom_call.1} parent=1 // pred_fallthru
      _
    %63 = vsyncpa [#allocation3], 1
    %64 = vsyncpa [#allocation4], 1

</llo_original>
